<compile_context>
chip_gen: v7x
topology: tpu7x:2x2x1
jax: 0.10.0
libtpu: 0.0.40
codegen_flags: <defaults>
</compile_context>

<pallas_src>
import jax
import jax.numpy as jnp
from jax.experimental import pallas as pl
from jax.experimental.pallas import tpu as pltpu


def _pick_chunk(seq_len: int) -> int:
    """Largest chunk size in {256,...,8} that divides seq_len; else the whole sequence."""
    for ts in (256, 128, 64, 32, 16, 8):
        if seq_len % ts == 0:
            return ts
    return seq_len


def _clip_embedding_kernel(tok_ref, tok_emb_hbm, pos_ref, o_ref, gbuf, sems):
    # tok_ref:     SMEM (B, S) int32 scalar-prefetch token ids.
    # tok_emb_hbm: HBM  (V, D) token-embedding table (raw ref, manual DMA gather).
    # pos_ref:     VMEM (S, D) positional embedding, resident across the whole grid.
    # o_ref:       VMEM (1, TS, D) output tile.
    # gbuf:        VMEM (2, TS, D) double-buffered gather scratch.
    # sems:        DMA semaphores, one per buffer slot.
    b = pl.program_id(0)
    c = pl.program_id(1)
    nc = pl.num_programs(1)
    ts = gbuf.shape[1]

    def issue_gather(bb, cc, slot):
        base = cc * ts

        @pl.loop(0, ts)
        def _(t):
            tok_id = tok_ref[bb, base + t]
            pltpu.make_async_copy(
                tok_emb_hbm.at[tok_id], gbuf.at[slot, t], sems.at[slot]
            ).start()

    slot = c % 2

    # Prime the first chunk of this batch row.
    @pl.when(c == 0)
    def _():
        issue_gather(b, 0, 0)

    # Prefetch the next chunk of this row into the other slot BEFORE waiting, so its
    # DMAs overlap the current chunk's tail latency, the VPU add and the output store.
    @pl.when(c + 1 < nc)
    def _():
        issue_gather(b, c + 1, 1 - slot)

    # Wait for every row copy of the current chunk (all signal the same per-slot sem).
    @pl.loop(0, ts)
    def _(t):
        pltpu.make_async_copy(
            tok_emb_hbm.at[0], gbuf.at[slot, t], sems.at[slot]
        ).wait()

    start = pl.multiple_of(c * ts, ts)
    pos = pos_ref[pl.ds(start, ts), :]
    # The add promotes to the wider dtype (e.g. bf16 table + f32 pos -> f32 accumulate),
    # and the result is cast to the output dtype on store.
    o_ref[0] = (gbuf[slot] + pos).astype(o_ref.dtype)


def clip_embedding(tokens, token_embedding, position_embedding, *, chunk_tokens=None):
    """tokens (B,S) int -> token_embedding[tokens] + position_embedding, shape (B,S,D)."""
    B, S = tokens.shape
    V, D = token_embedding.shape
    assert position_embedding.shape == (S, D)

    ts = _pick_chunk(S) if chunk_tokens is None else chunk_tokens
    assert S % ts == 0, "chunk_tokens must divide the sequence length"
    nc = S // ts

    # Clamp ids: an out-of-range id would otherwise silently DMA the wrong HBM row.
    tokens = jnp.clip(tokens.astype(jnp.int32), 0, V - 1)

    out_dtype = token_embedding.dtype
    tok_bytes = jnp.dtype(token_embedding.dtype).itemsize
    pos_bytes = jnp.dtype(position_embedding.dtype).itemsize
    out_bytes = jnp.dtype(out_dtype).itemsize
    cost = pl.CostEstimate(
        flops=B * S * D,
        transcendentals=0,
        bytes_accessed=(B * S * 4                      # token ids
                        + B * S * D * tok_bytes        # gathered embedding rows
                        + S * D * pos_bytes            # positional table (once)
                        + B * S * D * out_bytes),      # output writeback
    )

    grid_spec = pltpu.PrefetchScalarGridSpec(
        num_scalar_prefetch=1,
        grid=(B, nc),
        in_specs=[
            # Token-embedding table stays in HBM; rows are gathered manually via DMA.
            pl.BlockSpec(memory_space=pl.ANY),
            # Positional table is fetched once and stays VMEM-resident (constant block).
            pl.BlockSpec((S, D), lambda b, c, tok: (0, 0)),
        ],
        out_specs=pl.BlockSpec((1, ts, D), lambda b, c, tok: (b, c, 0)),
        scratch_shapes=[
            pltpu.VMEM((2, ts, D), token_embedding.dtype),
            pltpu.SemaphoreType.DMA((2,)),
        ],
    )

    return pl.pallas_call(
        _clip_embedding_kernel,
        grid_spec=grid_spec,
        out_shape=jax.ShapeDtypeStruct((B, S, D), out_dtype),
        compiler_params=pltpu.CompilerParams(
            dimension_semantics=("parallel", "arbitrary"),
        ),
        cost_estimate=cost,
    )(tokens, token_embedding, position_embedding)


if __name__ == "__main__":
    key = jax.random.PRNGKey(0)

    def _check(batch, n_token, n_embd, n_vocab, chunk_tokens=None):
        k_tok, k_emb, k_pos = jax.random.split(jax.random.fold_in(key, n_token), 3)
        tokens = jax.random.randint(
            k_tok, (batch, n_token), 0, n_vocab, dtype=jnp.int32)
        # nn.Embedding default init ~ N(0, 1).
        token_embedding = jax.random.normal(k_emb, (n_vocab, n_embd), dtype=jnp.float32)
        # PyTorch inits position_embedding to zeros; small non-zero init so the add
        # path is actually exercised.
        position_embedding = 0.01 * jax.random.normal(
            k_pos, (n_token, n_embd), dtype=jnp.float32)

        out = clip_embedding(tokens, token_embedding, position_embedding,
                             chunk_tokens=chunk_tokens)
        out = jax.block_until_ready(out)

        ref = token_embedding[tokens] + position_embedding[None, :, :]
        assert out.shape == (batch, n_token, n_embd)
        assert jnp.allclose(out, ref, atol=1e-6), "mismatch vs reference"

    # Small module-consistent shapes (single chunk per batch row).
    _check(batch=2, n_token=8, n_embd=128, n_vocab=64)
    # Multi-chunk configuration exercising the double-buffered gather / prefetch path.
    _check(batch=2, n_token=32, n_embd=128, n_vocab=64, chunk_tokens=8)

    print("KERNEL_OK")
</pallas_src>

<mosaic_0001>
module attributes {stable_mosaic.version = 11 : i64} {
  func.func @_clip_embedding_kernel(%arg0: i32, %arg1: i32, %arg2: memref<2x8xi32, #tpu.memory_space<smem>>, %arg3: memref<64x128xf32, #tpu.memory_space<any>>, %arg4: memref<8x128xf32, #tpu.memory_space<vmem>>, %arg5: memref<1x8x128xf32, #tpu.memory_space<vmem>>, %arg6: memref<2x8x128xf32, #tpu.memory_space<vmem>>, %arg7: memref<2x!tpu.dma_semaphore, #tpu.memory_space<semaphore_mem>>) attributes {dimension_semantics = [#tpu.dimension_semantics<parallel>, #tpu.dimension_semantics<arbitrary>], iteration_bounds = array<i64: 2, 1>, scalar_prefetch = 1 : i64, scratch_operands = 2 : i64, tpu.core_type = #tpu.core_type<tc>, window_params = [{}, {pipeline_mode = #tpu.pipeline_mode<synchronous>, transform_indices = @transform_1, window_bounds = array<i64: 8, 128>}, {transform_indices = @transform_2, window_bounds = array<i64: 1, 8, 128>}]} {
    %c2_i32 = arith.constant 2 : i32
    %c0_i32 = arith.constant 0 : i32
    %0 = arith.cmpi eq, %c2_i32, %c0_i32 : i32
    %c1_i32 = arith.constant 1 : i32
    %1 = arith.select %0, %c1_i32, %c2_i32 : i32
    %2 = arith.remsi %arg1, %1 : i32
    %c0_i32_0 = arith.constant 0 : i32
    %3 = arith.cmpi ne, %2, %c0_i32_0 : i32
    %c0_i32_1 = arith.constant 0 : i32
    %4 = arith.cmpi slt, %2, %c0_i32_1 : i32
    %c0_i32_2 = arith.constant 0 : i32
    %5 = arith.cmpi slt, %1, %c0_i32_2 : i32
    %6 = arith.xori %4, %5 : i1
    %7 = arith.andi %6, %3 : i1
    %8 = arith.addi %2, %1 : i32
    %9 = arith.select %7, %8, %2 : i32
    %c0_i32_3 = arith.constant 0 : i32
    %10 = arith.cmpi eq, %arg1, %c0_i32_3 : i32
    %11 = arith.extui %10 : i1 to i32
    %c0_i32_4 = arith.constant 0 : i32
    %12 = arith.cmpi ne, %11, %c0_i32_4 : i32
    scf.if %12 {
      %c0_i32_17 = arith.constant 0 : i32
      %c8_i32_18 = arith.constant 8 : i32
      %29 = arith.addi %c0_i32_17, %c8_i32_18 : i32
      %c1_i32_19 = arith.constant 1 : i32
      scf.for %arg8 = %c0_i32_17 to %29 step %c1_i32_19  : i32 {
        %c1_i32_21 = arith.constant 1 : i32
        %30 = arith.muli %arg8, %c1_i32_21 : i32
        %c0_i32_22 = arith.constant 0 : i32
        %31 = arith.addi %c0_i32_22, %30 : i32
        %c0_i32_23 = arith.constant 0 : i32
        %32 = arith.addi %c0_i32_23, %31 : i32
        %33 = arith.index_cast %arg0 : i32 to index
        %34 = arith.index_cast %32 : i32 to index
        %35 = memref.load %arg2[%33, %34] : memref<2x8xi32, #tpu.memory_space<smem>>
        %c0_i32_24 = arith.constant 0 : i32
        %c0_i32_25 = arith.constant 0 : i32
        %c0_i32_26 = arith.constant 0 : i32
        %36 = tpu.memref_slice %arg3[%35, %c0_i32_26] : memref<64x128xf32, #tpu.memory_space<any>> -> memref<1x128xf32, #tpu.memory_space<any>>
        %37 = tpu.memref_squeeze %36 : memref<1x128xf32, #tpu.memory_space<any>> -> memref<128xf32, #tpu.memory_space<any>>
        %c0_i32_27 = arith.constant 0 : i32
        %38 = tpu.memref_slice %arg6[%c0_i32_24, %31, %c0_i32_27] : memref<2x8x128xf32, #tpu.memory_space<vmem>> -> memref<1x1x128xf32, #tpu.memory_space<vmem>>
        %39 = tpu.memref_squeeze %38 : memref<1x1x128xf32, #tpu.memory_space<vmem>> -> memref<128xf32, #tpu.memory_space<vmem>>
        %40 = tpu.memref_slice %arg7[%c0_i32_25] : memref<2x!tpu.dma_semaphore, #tpu.memory_space<semaphore_mem>> -> memref<1x!tpu.dma_semaphore, #tpu.memory_space<semaphore_mem>>
        %41 = tpu.memref_squeeze %40 : memref<1x!tpu.dma_semaphore, #tpu.memory_space<semaphore_mem>> -> memref<!tpu.dma_semaphore, #tpu.memory_space<semaphore_mem>>
        tpu.enqueue_dma source(%37 : memref<128xf32, #tpu.memory_space<any>>) target(%39 : memref<128xf32, #tpu.memory_space<vmem>>) target_semaphore(%41 : memref<!tpu.dma_semaphore, #tpu.memory_space<semaphore_mem>>)
      }
      %c8_i32_20 = arith.constant 8 : i32
    } else {
    }
    %c1_i32_5 = arith.constant 1 : i32
    %13 = arith.addi %arg1, %c1_i32_5 : i32
    %c1_i32_6 = arith.constant 1 : i32
    %14 = arith.cmpi slt, %13, %c1_i32_6 : i32
    %15 = arith.extui %14 : i1 to i32
    %c0_i32_7 = arith.constant 0 : i32
    %16 = arith.cmpi ne, %15, %c0_i32_7 : i32
    scf.if %16 {
      %c1_i32_17 = arith.constant 1 : i32
      %29 = arith.addi %arg1, %c1_i32_17 : i32
      %c1_i32_18 = arith.constant 1 : i32
      %30 = arith.subi %c1_i32_18, %9 : i32
      %c8_i32_19 = arith.constant 8 : i32
      %31 = arith.muli %29, %c8_i32_19 : i32
      %c0_i32_20 = arith.constant 0 : i32
      %c8_i32_21 = arith.constant 8 : i32
      %32 = arith.addi %c0_i32_20, %c8_i32_21 : i32
      %c1_i32_22 = arith.constant 1 : i32
      scf.for %arg8 = %c0_i32_20 to %32 step %c1_i32_22  : i32 {
        %c1_i32_24 = arith.constant 1 : i32
        %33 = arith.muli %arg8, %c1_i32_24 : i32
        %c0_i32_25 = arith.constant 0 : i32
        %34 = arith.addi %c0_i32_25, %33 : i32
        %35 = arith.addi %31, %34 : i32
        %36 = arith.index_cast %arg0 : i32 to index
        %37 = arith.index_cast %35 : i32 to index
        %38 = memref.load %arg2[%36, %37] : memref<2x8xi32, #tpu.memory_space<smem>>
        %c0_i32_26 = arith.constant 0 : i32
        %39 = tpu.memref_slice %arg3[%38, %c0_i32_26] : memref<64x128xf32, #tpu.memory_space<any>> -> memref<1x128xf32, #tpu.memory_space<any>>
        %40 = tpu.memref_squeeze %39 : memref<1x128xf32, #tpu.memory_space<any>> -> memref<128xf32, #tpu.memory_space<any>>
        %c0_i32_27 = arith.constant 0 : i32
        %41 = tpu.memref_slice %arg6[%30, %34, %c0_i32_27] : memref<2x8x128xf32, #tpu.memory_space<vmem>> -> memref<1x1x128xf32, #tpu.memory_space<vmem>>
        %42 = tpu.memref_squeeze %41 : memref<1x1x128xf32, #tpu.memory_space<vmem>> -> memref<128xf32, #tpu.memory_space<vmem>>
        %43 = tpu.memref_slice %arg7[%30] : memref<2x!tpu.dma_semaphore, #tpu.memory_space<semaphore_mem>> -> memref<1x!tpu.dma_semaphore, #tpu.memory_space<semaphore_mem>>
        %44 = tpu.memref_squeeze %43 : memref<1x!tpu.dma_semaphore, #tpu.memory_space<semaphore_mem>> -> memref<!tpu.dma_semaphore, #tpu.memory_space<semaphore_mem>>
        tpu.enqueue_dma source(%40 : memref<128xf32, #tpu.memory_space<any>>) target(%42 : memref<128xf32, #tpu.memory_space<vmem>>) target_semaphore(%44 : memref<!tpu.dma_semaphore, #tpu.memory_space<semaphore_mem>>)
      }
      %c8_i32_23 = arith.constant 8 : i32
    } else {
    }
    %c0_i32_8 = arith.constant 0 : i32
    %c8_i32 = arith.constant 8 : i32
    %17 = arith.addi %c0_i32_8, %c8_i32 : i32
    %c1_i32_9 = arith.constant 1 : i32
    scf.for %arg8 = %c0_i32_8 to %17 step %c1_i32_9  : i32 {
      %c1_i32_17 = arith.constant 1 : i32
      %29 = arith.muli %arg8, %c1_i32_17 : i32
      %c0_i32_18 = arith.constant 0 : i32
      %30 = arith.addi %c0_i32_18, %29 : i32
      %c0_i32_19 = arith.constant 0 : i32
      %c0_i32_20 = arith.constant 0 : i32
      %31 = tpu.memref_slice %arg3[%c0_i32_19, %c0_i32_20] : memref<64x128xf32, #tpu.memory_space<any>> -> memref<1x128xf32, #tpu.memory_space<any>>
      %32 = tpu.memref_squeeze %31 : memref<1x128xf32, #tpu.memory_space<any>> -> memref<128xf32, #tpu.memory_space<any>>
      %c0_i32_21 = arith.constant 0 : i32
      %33 = tpu.memref_slice %arg6[%9, %30, %c0_i32_21] : memref<2x8x128xf32, #tpu.memory_space<vmem>> -> memref<1x1x128xf32, #tpu.memory_space<vmem>>
      %34 = tpu.memref_squeeze %33 : memref<1x1x128xf32, #tpu.memory_space<vmem>> -> memref<128xf32, #tpu.memory_space<vmem>>
      %35 = tpu.memref_slice %arg7[%9] : memref<2x!tpu.dma_semaphore, #tpu.memory_space<semaphore_mem>> -> memref<1x!tpu.dma_semaphore, #tpu.memory_space<semaphore_mem>>
      %36 = tpu.memref_squeeze %35 : memref<1x!tpu.dma_semaphore, #tpu.memory_space<semaphore_mem>> -> memref<!tpu.dma_semaphore, #tpu.memory_space<semaphore_mem>>
      tpu.wait_dma2 semaphore(%36 : memref<!tpu.dma_semaphore, #tpu.memory_space<semaphore_mem>>) src(%32 : memref<128xf32, #tpu.memory_space<any>>) dst(%34 : memref<128xf32, #tpu.memory_space<vmem>>)
    }
    %c8_i32_10 = arith.constant 8 : i32
    %c8_i32_11 = arith.constant 8 : i32
    %18 = arith.muli %arg1, %c8_i32_11 : i32
    %19 = tpu.assume_multiple %18, 8 : i32
    %20 = arith.index_cast %19 : i32 to index
    %c0 = arith.constant 0 : index
    %21 = vector.load %arg4[%20, %c0] : memref<8x128xf32, #tpu.memory_space<vmem>>, vector<8x128xf32>
    %22 = arith.index_cast %9 : i32 to index
    %c0_12 = arith.constant 0 : index
    %c0_13 = arith.constant 0 : index
    %23 = vector.load %arg6[%22, %c0_12, %c0_13] : memref<2x8x128xf32, #tpu.memory_space<vmem>>, vector<1x8x128xf32>
    %24 = vector.shape_cast %23 : vector<1x8x128xf32> to vector<8x128xf32>
    %25 = arith.addf %24, %21 : vector<8x128xf32>
    %c0_14 = arith.constant 0 : index
    %c0_15 = arith.constant 0 : index
    %c0_16 = arith.constant 0 : index
    %26 = vector.load %arg5[%c0_14, %c0_15, %c0_16] : memref<1x8x128xf32, #tpu.memory_space<vmem>>, vector<1x8x128xf32>
    %27 = vector.shape_cast %26 : vector<1x8x128xf32> to vector<8x128xf32>
    %28 = vector.shape_cast %25 : vector<8x128xf32> to vector<1x8x128xf32>
    tpu.vector_store %arg5[%c0_14, %c0_15, %c0_16], %28 {strides = array<i32>} : memref<1x8x128xf32, #tpu.memory_space<vmem>>, vector<1x8x128xf32>,
    return
  }
  func.func @transform_1(%arg0: i32, %arg1: i32, %arg2: memref<2x8xi32, #tpu.memory_space<smem>>) -> (i32, i32) {
    %c0_i32 = arith.constant 0 : i32
    %c0_i32_0 = arith.constant 0 : i32
    %c0_i32_1 = arith.constant 0 : i32
    return %c0_i32, %c0_i32_0 : i32, i32
  }
  func.func @transform_2(%arg0: i32, %arg1: i32, %arg2: memref<2x8xi32, #tpu.memory_space<smem>>) -> (i32, i32, i32) {
    %c0_i32 = arith.constant 0 : i32
    %c0_i32_0 = arith.constant 0 : i32
    return %arg0, %arg1, %c0_i32 : i32, i32, i32
  }
}

</mosaic_0001>

<llo_original>
// kernel: tpu_custom_call.1
$region0: #{tpu_custom_call.1}
  #allocation0 [shape = 'u32[]', space=smem, size = 0x4, offset = 0x4, fixed_abs, tag = 'smem constant byte address 0x4 - core index']
  #allocation1 [shape = 'u32[144,128]{1,0:T(1,128)}', space=vmem, size = 0x12000, scoped, tag = 'internal scratch']
  #allocation2 [shape = 'f32[2,8,128]{2,1,0:T(8,128)}', space=vmem, size = 0x2000, scoped, tag = 'scratch operand']
  #allocation3 [shape = 's32[2]{0}', space=sflag, size = 0x8, scoped, tag = 'scratch operand']
  #allocation4 [shape = 's32[1]{0}', space=sflag, size = 0x4, scoped, tag = 'scoped memory for tpu_custom_call.1']
  #allocation5 [shape = 'u8[1024]{0}', space=smem, size = 0x400, scoped, tag = 'prefetched SMEM operand 0']
  #allocation10 [shape = 's32[]', space=sflag, size = 0x4, offset = 0, fixed_abs, tag = 'sflag constant byte address 0x0 - dummy sync flag']
  #allocation11 [shape = 's32[]', space=sflag, size = 0x4, offset = 0, fixed_abs, tag = 'sflag constant byte address 0x0 - dummy sync flag']
  #allocation12 [shape = 'u32[]', space=smem, size = 0x4, offset = 0x44, fixed_abs, tag = 'smem constant byte address 0x44 - assertion arg 0']
  #allocation13 [shape = 'u32[]', space=smem, size = 0x4, offset = 0x48, fixed_abs, tag = 'smem constant byte address 0x48 - assertion arg 1']
  #allocation14 [shape = 's32[]', space=sflag, size = 0x4, offset = 0, fixed_abs, tag = 'sflag constant byte address 0x0 - dummy sync flag']
  #allocation15 [shape = 's32[]', space=sflag, size = 0x4, offset = 0, fixed_abs, tag = 'sflag constant byte address 0x0 - dummy sync flag']
  %s0 = inlined_call_operand.hbm [shape: s32[2,8], index: 0, kind: input, shape index: {}]
  %s1 = inlined_call_operand.hbm [shape: f32[64,128], index: 1, kind: input, shape index: {}]
  %s2 = inlined_call_operand.hbm [shape: f32[8,128], index: 2, kind: input, shape index: {}]
  %s3 = inlined_call_operand.hbm [shape: f32[2,8,128], index: 3, kind: output, shape index: {}]
  %s4 = sld [smem:[#allocation0]]
  $region78: #{tpu_custom_call.1} parent=0
    _
  %s6 = ssub.s32 1, %s4
  %s7 = scalar_select 0, %s6, %s4
  %9 = dma.hbm_to_smem %s0, 32, [#allocation5], [#allocation4]
  %10 = dma.done [#allocation4], 32
  %11 = sfence
  $region1: #{tpu_custom_call.1} parent=0
    #allocation6 [shape = 'u8[4096]{0}', space=vmem, size = 0x1000, scoped, tag = 'input window, operand 2, single buffered']
    #allocation7 [shape = 's32[2]{0}', space=sflag, size = 0x8, scoped, tag = 'scoped memory for tpu_custom_call.1']
    #allocation8 [shape = 's32[2]{0}', space=sflag, size = 0x8, scoped, tag = 'scoped memory for tpu_custom_call.1']
    #allocation9 [shape = 'u8[8192]{0}', space=vmem, size = 0x2000, scoped, tag = 'output window, operand 0']
    %12 = vsyncpa [#allocation7], 0
    %13 = vsyncpa [#allocation8], 0
    %s14 = scalar_lea.sflag [#allocation8], 1
    %15 = vsyncpa %s14, 0
    loop: start=0, step=1, limit=4
    $region2: #{tpu_custom_call.1} parent=1 // loop_pre_header
      _
    $region3: #{tpu_custom_call.1} parent=1 // loop_header
      %s17 = sphi 0, %s21
      %p18 = scmp.ge.s32.totalorder %s17, 4
      %s24 = sphi 0, %s36
      %s25 = sphi 0, %s32
      %s26 = sphi 0, %s24
      %s27 = sphi 0, %s25
      %s28 = sphi 0, %s26
      %s29 = sphi 0, %s27
      %s37 = sphi 0, %s37
      %s39 = sphi 0, %s37
      %s40 = sphi 0, %s39
      %s54 = sphi 0, %s40
      %s62 = sphi 0, %s64
      %s65 = sphi 0, %s62
      %s66 = sphi 0, %s65
      %s82 = sphi 0, %s66
    $region4: #{tpu_custom_call.1} parent=1 // loop_header_branch
      %20 = sbr.rel (%p18) target = $region8
    $region5: #{tpu_custom_call.1} parent=1 // loop_body
      %s22 = ssub.s32 %s17, 1
      %s23 = ssub.s32 %s17, 2
      %s30 = sadd.s32 1, %s25
      %p31 = scmp.ge.s32.totalorder %s30, 1
      %s32 = scalar_select %p31, 0, %s30
      %s33 = sadd.s32 1, %s24
      %s34 = scalar_select %p31, %s33, %s24
      %p35 = scmp.ge.s32.totalorder %s34, 2
      %s36 = scalar_select %p35, 0, %s34
      %s38 = sadd.s32 %s37, 1
      %p41 = scmp.eq.s32.totalorder %s17, 1
      %p42 = scmp.ne.s32.totalorder %s37, %s39
      %p43 = scmp.eq.s32.totalorder %s17, 0
      %p44 = por %p42, %p43
      %p45 = scmp.ne.s32.totalorder %s37, %s39
      %p46 = scmp.eq.s32.totalorder %s22, 1
      %p47 = por %p45, %p46
      %p48 = scmp.ne.s32.totalorder %s39, %s40
      %p49 = scmp.eq.s32.totalorder %s22, 0
      %p50 = por %p48, %p49
      %p51 = scmp.ne.s32.totalorder %s39, %s40
      %p52 = scmp.eq.s32.totalorder %s23, 1
      %p53 = por %p51, %p52
      %p55 = scmp.ne.s32.totalorder %s40, %s54
      %p56 = scmp.eq.s32.totalorder %s23, 0
      %p57 = por %p55, %p56
      %s58 = ssub.s32 %s24, %s36
      %s59 = ssub.s32 %s25, %s32
      %s60 = sor.u32 %s58, %s59
      %p61 = scmp.eq.s32.totalorder %s60, 0
      %s63 = sadd.s32 %s62, 1
      %s64 = scalar_select %p61, %s62, %s63
      %p67 = pneg %p61
      %p68 = scmp.eq.s32.totalorder %s17, 1
      %p69 = por %p67, %p68
      %p70 = scmp.ne.s32.totalorder %s62, %s65
      %p71 = scmp.eq.s32.totalorder %s17, 0
      %p72 = por %p70, %p71
      %p73 = scmp.ne.s32.totalorder %s62, %s65
      %p74 = scmp.eq.s32.totalorder %s22, 1
      %p75 = por %p73, %p74
      %p76 = scmp.ne.s32.totalorder %s65, %s66
      %p77 = scmp.eq.s32.totalorder %s22, 0
      %p78 = por %p76, %p77
      %p79 = scmp.ne.s32.totalorder %s65, %s66
      %p80 = scmp.eq.s32.totalorder %s23, 1
      %p81 = por %p79, %p80
      %p83 = scmp.ne.s32.totalorder %s66, %s82
      %p84 = scmp.eq.s32.totalorder %s23, 0
      %p85 = por %p83, %p84
      %p86 = scmp.le.s32.totalorder 1, %s17
      %p87 = scmp.lt.s32.totalorder %s17, 3
      %p88 = pnand %p86, %p87
      %p89 = pneg %p88
      // Predicated region
      $region9: #{tpu_custom_call.1} parent=5 // pred_check
        _
      $region10: #{tpu_custom_call.1} parent=5 // pred_check_branch
        %91 = sbr.rel (%p88) target = $region12
      $region11: #{tpu_custom_call.1} parent=5 // pred_region
        %s92 = ssub.s32 %s17, 1
        // Predicated region
        $region13: #{tpu_custom_call.1} parent=11 // pred_check
          %p93 = pneg %p50
        $region14: #{tpu_custom_call.1} parent=11 // pred_check_branch
          %95 = sbr.rel (%p93) target = $region16
        $region15: #{tpu_custom_call.1} parent=11 // pred_region
          %s97 = ssub.s32 128, 128
          %98 = vsyncadd [#allocation7], %s97
          %s100 = sshll.u32 [#allocation6], 4
          %s101 = int_to_ptr.vmem [resolvable:$true] %s100
          %103 = dma.hbm_to_vmem [thread:$0]  %s2, 128, %s101, [#allocation7]
        $region16: #{tpu_custom_call.1} parent=11 // pred_fallthru
          _
      $region12: #{tpu_custom_call.1} parent=5 // pred_fallthru
        _
      %p104 = scmp.lt.s32.totalorder %s17, 2
      // Predicated region
      $region17: #{tpu_custom_call.1} parent=5 // pred_check
        %p105 = pneg %p104
      $region18: #{tpu_custom_call.1} parent=5 // pred_check_branch
        %107 = sbr.rel (%p105) target = $region20
      $region19: #{tpu_custom_call.1} parent=5 // pred_region
        _
      $region20: #{tpu_custom_call.1} parent=5 // pred_fallthru
        _
      %p108 = scmp.le.s32.totalorder 1, %s17
      %p109 = scmp.lt.s32.totalorder %s17, 3
      %p110 = pnand %p108, %p109
      %p111 = pneg %p110
      // Predicated region
      $region21: #{tpu_custom_call.1} parent=5 // pred_check
        _
      $region22: #{tpu_custom_call.1} parent=5 // pred_check_branch
        %113 = sbr.rel (%p110) target = $region24
      $region23: #{tpu_custom_call.1} parent=5 // pred_region
        %s114 = ssub.s32 %s17, 1
        // Predicated region
        $region25: #{tpu_custom_call.1} parent=23 // pred_check
          %p115 = pneg %p50
        $region26: #{tpu_custom_call.1} parent=23 // pred_check_branch
          %117 = sbr.rel (%p115) target = $region28
        $region27: #{tpu_custom_call.1} parent=23 // pred_region
          %118 = dma.done [#allocation7], 128
        $region28: #{tpu_custom_call.1} parent=23 // pred_fallthru
          _
        %p119 = pneg %p50
        %p120 = pneg %p47
        %p121 = pneg %p78
        %p122 = pneg %p75
        %s123 = sand.u32 %s65, 1
        %s124 = scalar_lea.sflag [#allocation8], %s123
        %s125 = sand.u32 %s65, 1
        %s126 = smul.addr %s125, 8
        %s127 = scalar_lea.vmem [#allocation9], %s126
        %p128 = scmp.lt.s32.totalorder %s27, 0
        %s129 = ssub.s32 0, %s27
        %s130 = scalar_select %p128, %s129, %s27
        %s131 = sand.u32 %s130, 1
        %s132 = ssub.s32 0, %s131
        %s133 = scalar_select %p128, %s132, %s131
        %p134 = scmp.ne.s32.totalorder %s133, 0
        %p135 = scmp.lt.s32.totalorder %s133, 0
        %p136 = pnand %p135, %p134
        %p137 = pneg %p136
        %s138 = sadd.s32 %s133, 2
        %s139 = scalar_select %p137, %s138, %s133
        %p140 = scmp.eq.s32.totalorder %s27, 0
        // Predicated region
        $region29: #{tpu_custom_call.1} parent=23 // pred_check
          %p141 = pneg %p140
        $region30: #{tpu_custom_call.1} parent=23 // pred_check_branch
          %143 = sbr.rel (%p141) target = $region32
        $region31: #{tpu_custom_call.1} parent=23 // pred_region
          loop: start=0, step=1, limit=8
          $region33: #{tpu_custom_call.1} parent=31 // loop_pre_header
            _
          $region34: #{tpu_custom_call.1} parent=31 // loop_header
            %s145 = sphi 0, %s149
            %p146 = scmp.ge.s32.totalorder %s145, 8
          $region35: #{tpu_custom_call.1} parent=31 // loop_header_branch
            %148 = sbr.rel (%p146) target = $region39
          $region36: #{tpu_custom_call.1} parent=31 // loop_body
            %s150 = sshra.s32 %s145, 7
            %s151 = sand.u32 %s145, 127
            %s152 = sadd.s32 %s150, %s26
            %s153 = smul.u32 %s152, 128
            %s154 = sshra.s32 %s145, 7
            %s155 = sand.u32 %s145, 127
            %s156 = sadd.s32 %s153, %s155
            %s157 = sld [smem:[#allocation5 + %s156]]
            %s158 = smul.addr %s157, 16
            %s159 = scalar_lea.hbm %s1, %s158
            %s160 = scalar_lea.vmem [#allocation2], %s145
            // Predicated region
            $region40: #{tpu_custom_call.1} parent=36 // pred_check
              _
            $region41: #{tpu_custom_call.1} parent=36 // pred_check_branch
              %162 = sbr.rel target = $region43
            $region42: #{tpu_custom_call.1} parent=36 // pred_region
              %163 = sst [smem:[#allocation12]] [#allocation11]
              %164 = sst [smem:[#allocation13]] [#allocation10]
            $region43: #{tpu_custom_call.1} parent=36 // pred_fallthru
              _
            %166 = shalt.err (0)
            %s168 = sshll.u32 %s160, 4
            %s169 = int_to_ptr.vmem [resolvable:$true] %s168
            %171 = dma.hbm_to_vmem [thread:$0]  %s159, 16, %s169, [#allocation3]
          $region37: #{tpu_custom_call.1} parent=31 // loop_footer
            %s149 = sadd.s32 1, %s145
          $region38: #{tpu_custom_call.1} parent=31 // loop_footer_branch
            %144 = sbr.rel target = $region34
          $region39: #{tpu_custom_call.1} parent=31 // loop_exit
            _
        $region32: #{tpu_custom_call.1} parent=23 // pred_fallthru
          _
        %s172 = sadd.s32 %s27, 1
        %p173 = scmp.lt.s32.totalorder %s172, 1
        // Predicated region
        $region44: #{tpu_custom_call.1} parent=23 // pred_check
          %p174 = pneg %p173
        $region45: #{tpu_custom_call.1} parent=23 // pred_check_branch
          %176 = sbr.rel (%p174) target = $region47
        $region46: #{tpu_custom_call.1} parent=23 // pred_region
          %s177 = ssub.s32 1, %s139
          %s178 = smul.u32 %s172, 8
          loop: start=0, step=1, limit=8
          $region48: #{tpu_custom_call.1} parent=46 // loop_pre_header
            _
          $region49: #{tpu_custom_call.1} parent=46 // loop_header
            %s180 = sphi 0, %s184
            %p181 = scmp.ge.s32.totalorder %s180, 8
          $region50: #{tpu_custom_call.1} parent=46 // loop_header_branch
            %183 = sbr.rel (%p181) target = $region54
          $region51: #{tpu_custom_call.1} parent=46 // loop_body
            %s185 = sadd.s32 %s178, %s180
            %s186 = sshra.s32 %s185, 7
            %s187 = sand.u32 %s185, 127
            %s188 = sadd.s32 %s186, %s26
            %s189 = smul.u32 %s188, 128
            %s190 = sshra.s32 %s185, 7
            %s191 = sand.u32 %s185, 127
            %s192 = sadd.s32 %s189, %s191
            %s193 = sld [smem:[#allocation5 + %s192]]
            %s194 = smul.addr %s193, 16
            %s195 = scalar_lea.hbm %s1, %s194
            %s196 = smul.u32 %s177, 8
            %s197 = sadd.s32 %s180, %s196
            %s198 = scalar_lea.vmem [#allocation2], %s197
            %s199 = scalar_lea.sflag [#allocation3], %s177
            // Predicated region
            $region55: #{tpu_custom_call.1} parent=51 // pred_check
              _
            $region56: #{tpu_custom_call.1} parent=51 // pred_check_branch
              %201 = sbr.rel target = $region58
            $region57: #{tpu_custom_call.1} parent=51 // pred_region
              %202 = sst [smem:[#allocation12]] [#allocation15]
              %203 = sst [smem:[#allocation13]] [#allocation14]
            $region58: #{tpu_custom_call.1} parent=51 // pred_fallthru
              _
            %205 = shalt.err (0)
            %s207 = sshll.u32 %s198, 4
            %s208 = int_to_ptr.vmem [resolvable:$true] %s207
            %210 = dma.hbm_to_vmem [thread:$0]  %s195, 16, %s208, %s199
          $region52: #{tpu_custom_call.1} parent=46 // loop_footer
            %s184 = sadd.s32 1, %s180
          $region53: #{tpu_custom_call.1} parent=46 // loop_footer_branch
            %179 = sbr.rel target = $region49
          $region54: #{tpu_custom_call.1} parent=46 // loop_exit
            _
        $region47: #{tpu_custom_call.1} parent=23 // pred_fallthru
          _
        loop: start=0, step=1, limit=8
        $region59: #{tpu_custom_call.1} parent=23 // loop_pre_header
          _
        $region60: #{tpu_custom_call.1} parent=23 // loop_header
          %s212 = sphi 0, %s216
          %p213 = scmp.ge.s32.totalorder %s212, 8
        $region61: #{tpu_custom_call.1} parent=23 // loop_header_branch
          %215 = sbr.rel (%p213) target = $region65
        $region62: #{tpu_custom_call.1} parent=23 // loop_body
          %s217 = scalar_lea.sflag [#allocation3], %s139
          %219 = dma.done %s217, 16
        $region63: #{tpu_custom_call.1} parent=23 // loop_footer
          %s216 = sadd.s32 1, %s212
        $region64: #{tpu_custom_call.1} parent=23 // loop_footer_branch
          %211 = sbr.rel target = $region60
        $region65: #{tpu_custom_call.1} parent=23 // loop_exit
          _
        %s220 = smul.u32 %s27, 8
        %s221 = scalar_lea.vmem [#allocation6], %s220
        %v222 = vld [vmem:[%s221] sm:$0xff]
        %s223 = smul.u32 %s139, 8
        %s224 = scalar_lea.vmem [#allocation2], %s223
        %v225 = vld [vmem:[%s224] sm:$0xff]
        %v226 = vadd.f32 %v225, %v222
        %227 = vst [vmem:[%s127] sm:$0xff] %v226
        %s228 = sand.u32 %s65, 1
        %s229 = scalar_lea.sflag [#allocation8], %s228
        %s230 = sand.u32 %s65, 1
        %s231 = smul.addr %s230, 8
        %s232 = scalar_lea.vmem [#allocation9], %s231
        // Predicated region
        $region66: #{tpu_custom_call.1} parent=23 // pred_check
          %p233 = pneg %p75
        $region67: #{tpu_custom_call.1} parent=23 // pred_check_branch
          %235 = sbr.rel (%p233) target = $region69
        $region68: #{tpu_custom_call.1} parent=23 // pred_region
          %s237 = ssub.s32 128, 128
          %238 = vsyncadd %s229, %s237
          %s239 = sadd.s32 %s27, %s26
          %s240 = smul.addr %s239, 128
          %s241 = scalar_lea.hbm %s3, %s240
          %s243 = sshll.u32 %s232, 4
          %s244 = int_to_ptr.vmem [resolvable:$true] %s243
          %246 = dma.vmem_to_hbm [thread:$0]  %s244, 128, %s241, %s229
        $region69: #{tpu_custom_call.1} parent=23 // pred_fallthru
          _
      $region24: #{tpu_custom_call.1} parent=5 // pred_fallthru
        _
      %p247 = scmp.le.s32.totalorder 2, %s17
      // Predicated region
      $region70: #{tpu_custom_call.1} parent=5 // pred_check
        %p248 = pneg %p247
      $region71: #{tpu_custom_call.1} parent=5 // pred_check_branch
        %250 = sbr.rel (%p248) target = $region73
      $region72: #{tpu_custom_call.1} parent=5 // pred_region
        %s251 = ssub.s32 %s17, 2
        // Predicated region
        $region74: #{tpu_custom_call.1} parent=72 // pred_check
          %p252 = pneg %p81
        $region75: #{tpu_custom_call.1} parent=72 // pred_check_branch
          %254 = sbr.rel (%p252) target = $region77
        $region76: #{tpu_custom_call.1} parent=72 // pred_region
          %s255 = sand.u32 %s66, 1
          %s256 = scalar_lea.sflag [#allocation8], %s255
          %s257 = sand.u32 %s66, 1
          %s258 = smul.addr %s257, 8
          %s259 = scalar_lea.vmem [#allocation9], %s258
          %260 = dma.done %s256, 128
        $region77: #{tpu_custom_call.1} parent=72 // pred_fallthru
          _
      $region73: #{tpu_custom_call.1} parent=5 // pred_fallthru
        _
    $region6: #{tpu_custom_call.1} parent=1 // loop_footer
      %s21 = sadd.s32 1, %s17
    $region7: #{tpu_custom_call.1} parent=1 // loop_footer_branch
      %16 = sbr.rel target = $region3
    $region8: #{tpu_custom_call.1} parent=1 // loop_exit
      _
    %261 = vsyncpa [#allocation7], 1
    %s262 = scalar_lea.sflag [#allocation7], 1
    %263 = vsyncpa %s262, 1
    %264 = vsyncpa [#allocation8], 1
    %s265 = scalar_lea.sflag [#allocation8], 1
    %266 = vsyncpa %s265, 1
  %267 = vsyncmov [#allocation3]
  %s268 = vpop.sfrf %267
  %p269 = scmp.eq.s32.totalorder %s268, 0
  %p270 = pneg %p269
  %272 = shalt.err (%p270)
  %s273 = scalar_lea.sflag [#allocation3], 1
  %274 = vsyncmov %s273
  %s275 = vpop.sfrf %274
  %p276 = scmp.eq.s32.totalorder %s275, 0
  %p277 = pneg %p276
  %279 = shalt.err (%p277)

</llo_original>
